<compile_context>
chip_gen: v6e
topology: v6e:2x2x1
jax: 0.10.0
libtpu: 0.0.40
codegen_flags: <defaults>
</compile_context>

<pallas_src>
import jax
import jax.numpy as jnp
from jax.experimental import pallas as pl
from jax.experimental.pallas import tpu as pltpu


def _round_up(v, m):
    return ((v + m - 1) // m) * m


def _vmem_capacity_bytes():
    """Physical VMEM of the attached chip (conservative fallback if unknown)."""
    try:
        fn = getattr(pltpu, "get_tpu_info", None)
        if fn is not None:
            cap = int(getattr(fn(), "vmem_capacity_bytes", 0))
            if cap > 0:
                return cap
    except Exception:
        pass
    return 64 * 1024 * 1024   # size of the smallest current generation (v7x)


def _pick_batch_block(N, C_in, C_out, cap=8):
    """Pack several batch rows per grid step when channels are tiny (amortizes
    the ~0.35us/step pipeline overhead) while keeping the number of *parallel*
    batch blocks >= 2 and even when possible (v7x shards the parallel axis
    across 2 TensorCores)."""
    if C_in * C_out >= 64 * 64 or N <= 1:
        return 1
    divisors = [d for d in range(1, min(cap, N) + 1) if N % d == 0]
    for ok in (lambda d: (N // d) >= 2 and (N // d) % 2 == 0,
               lambda d: (N // d) >= 2):
        cands = [d for d in divisors if ok(d)]
        if cands:
            return max(cands)
    return 1


def causal_conv1d(x, weight, bias, dilation=1, *,
                  compute_dtype=jnp.bfloat16,
                  out_dtype=None,
                  max_tile_l=8192):
    """Causal dilated 1-D convolution (PyTorch CausalConv1d forward).

    x:      (N, C_in, L)
    weight: (C_out, C_in, K)   -- PyTorch Conv1d weight layout
    bias:   (C_out,)
    returns (N, C_out, L) in `out_dtype` (default: x.dtype).
    """
    N, C_in, L = x.shape
    C_out, C_in_w, K = weight.shape
    assert C_in_w == C_in and dilation >= 1 and K >= 1
    pad = (K - 1) * dilation

    out_dt = jnp.dtype(x.dtype if out_dtype is None else out_dtype)
    cdt = jnp.dtype(compute_dtype)
    x_bytes = jnp.dtype(x.dtype).itemsize
    out_bytes = out_dt.itemsize

    # Sublane-aligned per-tap row count (f32 tile: 8 rows, bf16: 16, int8: 32).
    sub = {4: 8, 2: 16, 1: 32}.get(cdt.itemsize, 8)
    C_in_p = _round_up(C_in, sub)

    NB = _pick_batch_block(N, C_in, C_out)

    # Per-generation VMEM budget (v5e/v6e: 128 MiB physical, v7x: 64 MiB).
    vmem_cap = _vmem_capacity_bytes()
    budget = min(vmem_cap // 3, 48 * 1024 * 1024)

    def vmem_est(nb, tl):
        cir, cor = _round_up(C_in, 8), _round_up(C_out, 8)
        x_blk = 2 * nb * cir * tl * x_bytes             # double-buffered input
        o_blk = 2 * nb * cor * tl * out_bytes           # double-buffered output
        w_blk = 2 * cor * _round_up(K * C_in_p, 128) * cdt.itemsize + cor * 512
        halo = nb * cir * _round_up(max(pad, 1), 128) * cdt.itemsize
        col = K * C_in_p * nb * tl * cdt.itemsize       # fused im2col operand
        acc = cor * nb * tl * 4                         # f32 matmul result
        return int(1.25 * (x_blk + o_blk + w_blk + halo + 2 * col + acc))

    # ---- lane-dense, VMEM-budgeted L tile. ----
    if L <= 128:
        TL = L                              # one exact block (== full L dim)
    else:
        TL = max(128, min(max_tile_l, (L // 128) * 128))
        while TL > 128 and vmem_est(NB, TL) > budget:
            TL -= 128

    xr, L_arr = x, L
    if pad > TL:
        # The halo must fit inside a single previous tile.
        TL = _round_up(pad, 128)
        if vmem_est(NB, TL) > budget and NB > 1:
            NB = 1
        if TL > L:
            # Rare ((K-1)*dilation >= L): right-pad x with zeros so the L
            # blocks never exceed the array extent (cannot affect y[:, :, :L]).
            L_arr = _round_up(L, TL)
            xr = jnp.pad(x, ((0, 0), (0, 0), (0, L_arr - L)))
        # TODO(synk): pathologically large K*dilation can still exceed the
        # VMEM budget; a multi-tile halo would be needed for that case.
    assert pad <= TL

    # ---- host-side weight prep only (tiny). ----
    # w2[o, j*C_in_p + c] = weight[o, c, j] for c < C_in, 0 otherwise.
    w2 = jnp.transpose(weight, (0, 2, 1)).astype(cdt)          # (C_out, K, C_in)
    if C_in_p != C_in:
        w2 = jnp.pad(w2, ((0, 0), (0, 0), (0, C_in_p - C_in)))
    w2 = w2.reshape(C_out, K * C_in_p)
    b2 = bias.reshape(C_out, 1).astype(jnp.float32)

    grid = (N // NB, pl.cdiv(L_arr, TL))

    def kernel(x_ref, w_ref, b_ref, o_ref, *scratch):
        # x_ref : (NB, C_in, TL)        live input tile (x dtype)
        # w_ref : (C_out, K*C_in_p)     fused, tap-major, row-padded weight
        # b_ref : (C_out, 1)            f32 bias
        # o_ref : (NB, C_out, TL)       output tile
        # scratch[0] (pad > 0 only): (NB, C_in, pad) halo carried across L tiles
        x_t = x_ref[...].astype(cdt)

        halo = None
        if pad > 0:
            halo_ref = scratch[0]

            @pl.when(pl.program_id(1) == 0)
            def _zero_halo():
                halo_ref[...] = jnp.zeros_like(halo_ref)

            halo = halo_ref[...]                      # previous tile's tail
            halo_ref[...] = x_t[:, :, TL - pad:]      # tail for the next tile

        zrows = (jnp.zeros((C_in_p - C_in, TL), dtype=cdt)
                 if C_in_p != C_in else None)

        # Fused im2col operand (K*C_in_p, NB*TL): ONE MXU matmul per grid step.
        col_blocks = []
        for b in range(NB):
            taps = []
            for j in range(K):
                s = pad - j * dilation                # left shift of tap j
                if s == 0:
                    tap = x_t[b]
                elif s >= TL:                         # only possible when s == TL
                    tap = halo[b, :, j * dilation:]
                else:
                    tap = jnp.concatenate(
                        [halo[b, :, j * dilation:], x_t[b, :, :TL - s]], axis=-1)
                if zrows is not None:
                    tap = jnp.concatenate([tap, zrows], axis=0)
                taps.append(tap)
            col_blocks.append(taps[0] if K == 1
                              else jnp.concatenate(taps, axis=0))
        col = (col_blocks[0] if NB == 1
               else jnp.concatenate(col_blocks, axis=1))

        acc = jnp.dot(w_ref[...], col,
                      preferred_element_type=jnp.float32)      # (C_out, NB*TL)
        bias_col = b_ref[...]
        for b in range(NB):
            o_ref[b] = (acc[:, b * TL:(b + 1) * TL]
                        + bias_col).astype(o_ref.dtype)

    est = vmem_est(NB, TL)
    vmem_limit = int(min(0.75 * vmem_cap,
                         max(32 * 1024 * 1024, 2 * est + (8 << 20))))

    scratch_shapes = [pltpu.VMEM((NB, C_in, pad), cdt)] if pad > 0 else []

    y = pl.pallas_call(
        kernel,
        out_shape=jax.ShapeDtypeStruct((N, C_out, L_arr), out_dt),
        grid=grid,
        in_specs=[
            pl.BlockSpec((NB, C_in, TL), lambda nb, lt: (nb, 0, lt)),
            pl.BlockSpec((C_out, K * C_in_p), lambda nb, lt: (0, 0)),
            pl.BlockSpec((C_out, 1), lambda nb, lt: (0, 0)),
        ],
        out_specs=pl.BlockSpec((NB, C_out, TL), lambda nb, lt: (nb, 0, lt)),
        scratch_shapes=scratch_shapes,
        compiler_params=pltpu.CompilerParams(
            dimension_semantics=("parallel", "arbitrary"),
            vmem_limit_bytes=vmem_limit),
    )(xr, w2, b2)

    return y[:, :, :L] if L_arr != L else y


def _reference(x, weight, bias, dilation):
    """Pure-JAX reference matching PyTorch CausalConv1d.forward."""
    K = weight.shape[-1]
    pad = (K - 1) * dilation
    L = x.shape[-1]
    y = jax.lax.conv_general_dilated(
        x, weight, window_strides=(1,), padding=[(pad, pad)],
        rhs_dilation=(dilation,), dimension_numbers=("NCH", "OIH", "NCH"))
    return y[:, :, :L] + bias[None, :, None]   # == [:, :, :-pad]


if __name__ == "__main__":
    key = jax.random.PRNGKey(0)

    def _check(N, C_in, C_out, L, K, dilation, max_tile_l=8192):
        kx, kw, kb = jax.random.split(jax.random.fold_in(key, L), 3)
        x = jax.random.normal(kx, (N, C_in, L), dtype=jnp.float32)
        w = jax.random.normal(kw, (C_out, C_in, K), dtype=jnp.float32) * 0.1
        b = jax.random.normal(kb, (C_out,), dtype=jnp.float32) * 0.1
        y_ref = _reference(x, w, b, dilation)

        # Default perf path: bf16 operands on the MXU, f32 accumulation.
        y_bf16 = jax.block_until_ready(
            causal_conv1d(x, w, b, dilation=dilation, max_tile_l=max_tile_l))
        assert y_bf16.shape == (N, C_out, L)
        assert jnp.allclose(y_bf16, y_ref, atol=2e-2, rtol=2e-2), \
            f"bf16 kernel mismatch (N={N}, L={L})"

        # f32 path: structural check of tiling / halo carry / ragged edge.
        # Tolerance is loose enough to cover reduced-precision MXU passes;
        # structural bugs would produce O(0.1 - 1.0) errors.
        y_f32 = jax.block_until_ready(
            causal_conv1d(x, w, b, dilation=dilation, max_tile_l=max_tile_l,
                          compute_dtype=jnp.float32))
        assert jnp.allclose(y_f32, y_ref, atol=5e-3, rtol=5e-3), \
            f"f32 kernel mismatch (N={N}, L={L})"

    # Small shape from the module's forward (single L tile).
    _check(N=2, C_in=4, C_out=8, L=16, K=3, dilation=2)
    # Multi-tile + ragged last tile: exercises the halo carry across L tiles.
    _check(N=2, C_in=4, C_out=8, L=300, K=3, dilation=2, max_tile_l=128)

    print("KERNEL_OK")
</pallas_src>

<mosaic_0001>
module attributes {stable_mosaic.version = 11 : i64} {
  func.func @kernel(%arg0: i32, %arg1: i32, %arg2: memref<1x4x16xf32, #tpu.memory_space<vmem>>, %arg3: memref<8x48xbf16, #tpu.memory_space<vmem>>, %arg4: memref<8x1xf32, #tpu.memory_space<vmem>>, %arg5: memref<1x8x16xf32, #tpu.memory_space<vmem>>, %arg6: memref<1x4x4xbf16, #tpu.memory_space<vmem>>) attributes {dimension_semantics = [#tpu.dimension_semantics<parallel>, #tpu.dimension_semantics<arbitrary>], iteration_bounds = array<i64: 2, 1>, scalar_prefetch = 0 : i64, scratch_operands = 1 : i64, tpu.core_type = #tpu.core_type<tc>, window_params = [{transform_indices = @transform_0, window_bounds = array<i64: 1, 4, 16>}, {pipeline_mode = #tpu.pipeline_mode<synchronous>, transform_indices = @transform_1, window_bounds = array<i64: 8, 48>}, {pipeline_mode = #tpu.pipeline_mode<synchronous>, transform_indices = @transform_2, window_bounds = array<i64: 8, 1>}, {transform_indices = @transform_3, window_bounds = array<i64: 1, 8, 16>}]} {
    %c0 = arith.constant 0 : index
    %c0_0 = arith.constant 0 : index
    %c0_1 = arith.constant 0 : index
    %0 = vector.load %arg2[%c0, %c0_0, %c0_1] : memref<1x4x16xf32, #tpu.memory_space<vmem>>, vector<1x4x16xf32>
    %1 = arith.truncf %0 : vector<1x4x16xf32> to vector<1x4x16xbf16>
    %c0_i32 = arith.constant 0 : i32
    %2 = arith.cmpi eq, %arg1, %c0_i32 : i32
    %3 = arith.extui %2 : i1 to i32
    %c0_i32_2 = arith.constant 0 : i32
    %4 = arith.cmpi ne, %3, %c0_i32_2 : i32
    scf.if %4 {
      %cst_17 = arith.constant 0.000000e+00 : bf16
      %31 = vector.broadcast %cst_17 : bf16 to vector<1x4x4xbf16>
      %c0_18 = arith.constant 0 : index
      %c0_19 = arith.constant 0 : index
      %c0_20 = arith.constant 0 : index
      %32 = vector.load %arg6[%c0_18, %c0_19, %c0_20] : memref<1x4x4xbf16, #tpu.memory_space<vmem>>, vector<1x4x4xbf16>
      tpu.vector_store %arg6[%c0_18, %c0_19, %c0_20], %31 {strides = array<i32>} : memref<1x4x4xbf16, #tpu.memory_space<vmem>>, vector<1x4x4xbf16>,
    } else {
    }
    %c0_3 = arith.constant 0 : index
    %c0_4 = arith.constant 0 : index
    %c0_5 = arith.constant 0 : index
    %5 = vector.load %arg6[%c0_3, %c0_4, %c0_5] : memref<1x4x4xbf16, #tpu.memory_space<vmem>>, vector<1x4x4xbf16>
    %6 = vector.extract_strided_slice %1 {offsets = [0, 0, 12], sizes = [1, 4, 4], strides = [1, 1, 1]} : vector<1x4x16xbf16> to vector<1x4x4xbf16>
    %c0_6 = arith.constant 0 : index
    %c0_7 = arith.constant 0 : index
    %c0_8 = arith.constant 0 : index
    %7 = vector.load %arg6[%c0_6, %c0_7, %c0_8] : memref<1x4x4xbf16, #tpu.memory_space<vmem>>, vector<1x4x4xbf16>
    tpu.vector_store %arg6[%c0_6, %c0_7, %c0_8], %6 {strides = array<i32>} : memref<1x4x4xbf16, #tpu.memory_space<vmem>>, vector<1x4x4xbf16>,
    %cst = arith.constant 0.000000e+00 : bf16
    %8 = vector.broadcast %cst : bf16 to vector<12x16xbf16>
    %9 = vector.shape_cast %5 : vector<1x4x4xbf16> to vector<4x4xbf16>
    %10 = vector.extract_strided_slice %1 {offsets = [0, 0, 0], sizes = [1, 4, 12], strides = [1, 1, 1]} : vector<1x4x16xbf16> to vector<1x4x12xbf16>
    %11 = vector.shape_cast %10 : vector<1x4x12xbf16> to vector<4x12xbf16>
    %12 = tpu.concatenate %9, %11 in 1 : vector<4x4xbf16>, vector<4x12xbf16> -> vector<4x16xbf16>
    %13 = tpu.concatenate %12, %8 in 0 : vector<4x16xbf16>, vector<12x16xbf16> -> vector<16x16xbf16>
    %14 = vector.extract_strided_slice %5 {offsets = [0, 0, 2], sizes = [1, 4, 2], strides = [1, 1, 1]} : vector<1x4x4xbf16> to vector<1x4x2xbf16>
    %15 = vector.shape_cast %14 : vector<1x4x2xbf16> to vector<4x2xbf16>
    %16 = vector.extract_strided_slice %1 {offsets = [0, 0, 0], sizes = [1, 4, 14], strides = [1, 1, 1]} : vector<1x4x16xbf16> to vector<1x4x14xbf16>
    %17 = vector.shape_cast %16 : vector<1x4x14xbf16> to vector<4x14xbf16>
    %18 = tpu.concatenate %15, %17 in 1 : vector<4x2xbf16>, vector<4x14xbf16> -> vector<4x16xbf16>
    %19 = tpu.concatenate %18, %8 in 0 : vector<4x16xbf16>, vector<12x16xbf16> -> vector<16x16xbf16>
    %20 = vector.shape_cast %1 : vector<1x4x16xbf16> to vector<4x16xbf16>
    %21 = tpu.concatenate %20, %8 in 0 : vector<4x16xbf16>, vector<12x16xbf16> -> vector<16x16xbf16>
    %22 = tpu.concatenate %13, %19, %21 in 0 : vector<16x16xbf16>, vector<16x16xbf16>, vector<16x16xbf16> -> vector<48x16xbf16>
    %c0_9 = arith.constant 0 : index
    %c0_10 = arith.constant 0 : index
    %23 = vector.load %arg3[%c0_9, %c0_10] : memref<8x48xbf16, #tpu.memory_space<vmem>>, vector<8x48xbf16>
    %cst_11 = arith.constant dense<0.000000e+00> : vector<8x16xf32>
    %24 = tpu.matmul %23, %22, %cst_11 {dimension_numbers = #tpu.dot_dimension_numbers<[1], [0], [0], [1], [0, 0, 1, 1], [], []>} : vector<8x48xbf16>, vector<48x16xbf16>, vector<8x16xf32> -> vector<8x16xf32>
    %c0_12 = arith.constant 0 : index
    %c0_13 = arith.constant 0 : index
    %25 = vector.load %arg4[%c0_12, %c0_13] : memref<8x1xf32, #tpu.memory_space<vmem>>, vector<8x1xf32>
    %26 = vector.broadcast %25 : vector<8x1xf32> to vector<8x16xf32>
    %27 = arith.addf %24, %26 : vector<8x16xf32>
    %c0_14 = arith.constant 0 : index
    %c0_15 = arith.constant 0 : index
    %c0_16 = arith.constant 0 : index
    %28 = vector.load %arg5[%c0_14, %c0_15, %c0_16] : memref<1x8x16xf32, #tpu.memory_space<vmem>>, vector<1x8x16xf32>
    %29 = vector.shape_cast %28 : vector<1x8x16xf32> to vector<8x16xf32>
    %30 = vector.shape_cast %27 : vector<8x16xf32> to vector<1x8x16xf32>
    tpu.vector_store %arg5[%c0_14, %c0_15, %c0_16], %30 {strides = array<i32>} : memref<1x8x16xf32, #tpu.memory_space<vmem>>, vector<1x8x16xf32>,
    return
  }
  func.func @transform_0(%arg0: i32, %arg1: i32) -> (i32, i32, i32) {
    %c0_i32 = arith.constant 0 : i32
    %c0_i32_0 = arith.constant 0 : i32
    return %arg0, %c0_i32, %arg1 : i32, i32, i32
  }
  func.func @transform_1(%arg0: i32, %arg1: i32) -> (i32, i32) {
    %c0_i32 = arith.constant 0 : i32
    %c0_i32_0 = arith.constant 0 : i32
    %c0_i32_1 = arith.constant 0 : i32
    return %c0_i32, %c0_i32_0 : i32, i32
  }
  func.func @transform_2(%arg0: i32, %arg1: i32) -> (i32, i32) {
    %c0_i32 = arith.constant 0 : i32
    %c0_i32_0 = arith.constant 0 : i32
    %c0_i32_1 = arith.constant 0 : i32
    return %c0_i32, %c0_i32_0 : i32, i32
  }
  func.func @transform_3(%arg0: i32, %arg1: i32) -> (i32, i32, i32) {
    %c0_i32 = arith.constant 0 : i32
    %c0_i32_0 = arith.constant 0 : i32
    return %arg0, %c0_i32, %arg1 : i32, i32, i32
  }
}

</mosaic_0001>

<llo_original>
// kernel: tpu_custom_call.1
$region0: #{tpu_custom_call.1}
  #allocation0 [shape = 'u32[]', space=smem, size = 0x4, offset = 0x4, fixed_abs, tag = 'smem constant byte address 0x4 - core index']
  #allocation1 [shape = 'u32[144,128]{1,0:T(1,128)}', space=vmem, size = 0x12000, scoped, tag = 'internal scratch']
  #allocation2 [shape = 'bf16[1,4,4]{2,1,0:T(4,128)(2,1)}', space=vmem, size = 0x400, scoped, tag = 'scratch operand']
  %s0 = inlined_call_operand.vmem [shape: f32[2,4,16], index: 0, kind: input, shape index: {}]
  %s1 = inlined_call_operand.hbm [shape: bf16[8,48], index: 1, kind: input, shape index: {}]
  %s2 = inlined_call_operand.vmem [shape: f32[8,1], index: 2, kind: input, shape index: {}]
  %s3 = inlined_call_operand.hbm [shape: f32[2,8,16], index: 3, kind: output, shape index: {}]
  %s4 = sld [smem:[#allocation0]]
  $region53: #{tpu_custom_call.1} parent=0
    _
  %s6 = ssub.s32 1, %s4
  %s7 = scalar_select 0, %s6, %s4
  $region1: #{tpu_custom_call.1} parent=0
    #allocation3 [shape = 'u8[2048]{0}', space=vmem, size = 0x800, scoped, tag = 'input window, operand 1, single buffered']
    #allocation4 [shape = 's32[2]{0}', space=sflag, size = 0x8, scoped, tag = 'scoped memory for tpu_custom_call.1']
    #allocation5 [shape = 's32[2]{0}', space=sflag, size = 0x8, scoped, tag = 'scoped memory for tpu_custom_call.1']
    #allocation6 [shape = 'u8[8192]{0}', space=vmem, size = 0x2000, scoped, tag = 'output window, operand 0']
    %8 = vsyncpa [#allocation4], 0
    %9 = vsyncpa [#allocation5], 0
    %s10 = scalar_lea.sflag [#allocation5], 1
    %11 = vsyncpa %s10, 0
    loop: start=0, step=1, limit=4
    $region2: #{tpu_custom_call.1} parent=1 // loop_pre_header
      _
    $region3: #{tpu_custom_call.1} parent=1 // loop_header
      %s13 = sphi 0, %s17
      %p14 = scmp.ge.s32.totalorder %s13, 4
      %s20 = sphi 0, %s32
      %s21 = sphi 0, %s28
      %s22 = sphi 0, %s20
      %s23 = sphi 0, %s21
      %s24 = sphi 0, %s22
      %s25 = sphi 0, %s23
      %s37 = sphi 0, %s39
      %s40 = sphi 0, %s37
      %s41 = sphi 0, %s40
      %s57 = sphi 0, %s41
      %s61 = sphi 0, %s61
      %s63 = sphi 0, %s61
      %s64 = sphi 0, %s63
      %s78 = sphi 0, %s64
      %s82 = sphi 0, %s82
      %s84 = sphi 0, %s82
      %s85 = sphi 0, %s84
      %s99 = sphi 0, %s85
      %s107 = sphi 0, %s109
      %s110 = sphi 0, %s107
      %s111 = sphi 0, %s110
      %s127 = sphi 0, %s111
    $region4: #{tpu_custom_call.1} parent=1 // loop_header_branch
      %16 = sbr.rel (%p14) target = $region8
    $region5: #{tpu_custom_call.1} parent=1 // loop_body
      %s18 = ssub.s32 %s13, 1
      %s19 = ssub.s32 %s13, 2
      %s26 = sadd.s32 1, %s21
      %p27 = scmp.ge.s32.totalorder %s26, 1
      %s28 = scalar_select %p27, 0, %s26
      %s29 = sadd.s32 1, %s20
      %s30 = scalar_select %p27, %s29, %s20
      %p31 = scmp.ge.s32.totalorder %s30, 2
      %s32 = scalar_select %p31, 0, %s30
      %s33 = ssub.s32 %s20, %s32
      %s34 = ssub.s32 %s21, %s28
      %s35 = sor.u32 %s33, %s34
      %p36 = scmp.eq.s32.totalorder %s35, 0
      %s38 = sadd.s32 %s37, 1
      %s39 = scalar_select %p36, %s37, %s38
      %p42 = pneg %p36
      %p43 = scmp.eq.s32.totalorder %s13, 1
      %p44 = por %p42, %p43
      %p45 = scmp.ne.s32.totalorder %s37, %s40
      %p46 = scmp.eq.s32.totalorder %s13, 0
      %p47 = por %p45, %p46
      %p48 = scmp.ne.s32.totalorder %s37, %s40
      %p49 = scmp.eq.s32.totalorder %s18, 1
      %p50 = por %p48, %p49
      %p51 = scmp.ne.s32.totalorder %s40, %s41
      %p52 = scmp.eq.s32.totalorder %s18, 0
      %p53 = por %p51, %p52
      %p54 = scmp.ne.s32.totalorder %s40, %s41
      %p55 = scmp.eq.s32.totalorder %s19, 1
      %p56 = por %p54, %p55
      %p58 = scmp.ne.s32.totalorder %s41, %s57
      %p59 = scmp.eq.s32.totalorder %s19, 0
      %p60 = por %p58, %p59
      %s62 = sadd.s32 %s61, 1
      %p65 = scmp.eq.s32.totalorder %s13, 1
      %p66 = scmp.ne.s32.totalorder %s61, %s63
      %p67 = scmp.eq.s32.totalorder %s13, 0
      %p68 = por %p66, %p67
      %p69 = scmp.ne.s32.totalorder %s61, %s63
      %p70 = scmp.eq.s32.totalorder %s18, 1
      %p71 = por %p69, %p70
      %p72 = scmp.ne.s32.totalorder %s63, %s64
      %p73 = scmp.eq.s32.totalorder %s18, 0
      %p74 = por %p72, %p73
      %p75 = scmp.ne.s32.totalorder %s63, %s64
      %p76 = scmp.eq.s32.totalorder %s19, 1
      %p77 = por %p75, %p76
      %p79 = scmp.ne.s32.totalorder %s64, %s78
      %p80 = scmp.eq.s32.totalorder %s19, 0
      %p81 = por %p79, %p80
      %s83 = sadd.s32 %s82, 1
      %p86 = scmp.eq.s32.totalorder %s13, 1
      %p87 = scmp.ne.s32.totalorder %s82, %s84
      %p88 = scmp.eq.s32.totalorder %s13, 0
      %p89 = por %p87, %p88
      %p90 = scmp.ne.s32.totalorder %s82, %s84
      %p91 = scmp.eq.s32.totalorder %s18, 1
      %p92 = por %p90, %p91
      %p93 = scmp.ne.s32.totalorder %s84, %s85
      %p94 = scmp.eq.s32.totalorder %s18, 0
      %p95 = por %p93, %p94
      %p96 = scmp.ne.s32.totalorder %s84, %s85
      %p97 = scmp.eq.s32.totalorder %s19, 1
      %p98 = por %p96, %p97
      %p100 = scmp.ne.s32.totalorder %s85, %s99
      %p101 = scmp.eq.s32.totalorder %s19, 0
      %p102 = por %p100, %p101
      %s103 = ssub.s32 %s20, %s32
      %s104 = ssub.s32 %s21, %s28
      %s105 = sor.u32 %s103, %s104
      %p106 = scmp.eq.s32.totalorder %s105, 0
      %s108 = sadd.s32 %s107, 1
      %s109 = scalar_select %p106, %s107, %s108
      %p112 = pneg %p106
      %p113 = scmp.eq.s32.totalorder %s13, 1
      %p114 = por %p112, %p113
      %p115 = scmp.ne.s32.totalorder %s107, %s110
      %p116 = scmp.eq.s32.totalorder %s13, 0
      %p117 = por %p115, %p116
      %p118 = scmp.ne.s32.totalorder %s107, %s110
      %p119 = scmp.eq.s32.totalorder %s18, 1
      %p120 = por %p118, %p119
      %p121 = scmp.ne.s32.totalorder %s110, %s111
      %p122 = scmp.eq.s32.totalorder %s18, 0
      %p123 = por %p121, %p122
      %p124 = scmp.ne.s32.totalorder %s110, %s111
      %p125 = scmp.eq.s32.totalorder %s19, 1
      %p126 = por %p124, %p125
      %p128 = scmp.ne.s32.totalorder %s111, %s127
      %p129 = scmp.eq.s32.totalorder %s19, 0
      %p130 = por %p128, %p129
      %p131 = scmp.le.s32.totalorder 1, %s13
      %p132 = scmp.lt.s32.totalorder %s13, 3
      %p133 = pnand %p131, %p132
      %p134 = pneg %p133
      // Predicated region
      $region9: #{tpu_custom_call.1} parent=5 // pred_check
        _
      $region10: #{tpu_custom_call.1} parent=5 // pred_check_branch
        %136 = sbr.rel (%p133) target = $region12
      $region11: #{tpu_custom_call.1} parent=5 // pred_region
        %s137 = ssub.s32 %s13, 1
        // Predicated region
        $region13: #{tpu_custom_call.1} parent=11 // pred_check
          %p138 = pneg %p74
        $region14: #{tpu_custom_call.1} parent=11 // pred_check_branch
          %140 = sbr.rel (%p138) target = $region16
        $region15: #{tpu_custom_call.1} parent=11 // pred_region
          %s142 = ssub.s32 64, 64
          %143 = vsyncadd [#allocation4], %s142
          %s145 = sshll.u32 [#allocation3], 4
          %s146 = int_to_ptr.vmem [resolvable:$true] %s145
          %148 = dma.hbm_to_vmem [thread:$0]  %s1, 64, %s146, [#allocation4]
        $region16: #{tpu_custom_call.1} parent=11 // pred_fallthru
          _
        // Predicated region
        $region17: #{tpu_custom_call.1} parent=11 // pred_check
          %p149 = pneg %p95
        $region18: #{tpu_custom_call.1} parent=11 // pred_check_branch
          %151 = sbr.rel (%p149) target = $region20
        $region19: #{tpu_custom_call.1} parent=11 // pred_region
          _
        $region20: #{tpu_custom_call.1} parent=11 // pred_fallthru
          _
      $region12: #{tpu_custom_call.1} parent=5 // pred_fallthru
        _
      %p152 = scmp.lt.s32.totalorder %s13, 2
      // Predicated region
      $region21: #{tpu_custom_call.1} parent=5 // pred_check
        %p153 = pneg %p152
      $region22: #{tpu_custom_call.1} parent=5 // pred_check_branch
        %155 = sbr.rel (%p153) target = $region24
      $region23: #{tpu_custom_call.1} parent=5 // pred_region
        // Predicated region
        $region25: #{tpu_custom_call.1} parent=23 // pred_check
          %p156 = pneg %p47
        $region26: #{tpu_custom_call.1} parent=23 // pred_check_branch
          %158 = sbr.rel (%p156) target = $region28
        $region27: #{tpu_custom_call.1} parent=23 // pred_region
          %p159 = scmp.lt.s32.totalorder %s20, 1
          %s160 = scalar_select %p159, %s20, 1
          %p161 = scmp.lt.s32.totalorder %s21, 0
          %s162 = scalar_select %p161, %s21, 0
          %s163 = sadd.s32 %s162, %s160
          %s164 = smul.addr %s163, 4
          %s165 = scalar_lea.vmem %s0, %s164
        $region28: #{tpu_custom_call.1} parent=23 // pred_fallthru
          _
      $region24: #{tpu_custom_call.1} parent=5 // pred_fallthru
        _
      %p166 = scmp.le.s32.totalorder 1, %s13
      %p167 = scmp.lt.s32.totalorder %s13, 3
      %p168 = pnand %p166, %p167
      %p169 = pneg %p168
      // Predicated region
      $region29: #{tpu_custom_call.1} parent=5 // pred_check
        _
      $region30: #{tpu_custom_call.1} parent=5 // pred_check_branch
        %171 = sbr.rel (%p168) target = $region32
      $region31: #{tpu_custom_call.1} parent=5 // pred_region
        %s172 = ssub.s32 %s13, 1
        // Predicated region
        $region33: #{tpu_custom_call.1} parent=31 // pred_check
          %p173 = pneg %p74
        $region34: #{tpu_custom_call.1} parent=31 // pred_check_branch
          %175 = sbr.rel (%p173) target = $region36
        $region35: #{tpu_custom_call.1} parent=31 // pred_region
          %176 = dma.done [#allocation4], 64
        $region36: #{tpu_custom_call.1} parent=31 // pred_fallthru
          _
        %p177 = scmp.lt.s32.totalorder %s22, 1
        %s178 = scalar_select %p177, %s22, 1
        %p179 = scmp.lt.s32.totalorder %s23, 0
        %s180 = scalar_select %p179, %s23, 0
        %s181 = sadd.s32 %s180, %s178
        %s182 = smul.addr %s181, 4
        %s183 = scalar_lea.vmem %s0, %s182
        %p184 = pneg %p53
        %p185 = pneg %p50
        %p186 = pneg %p74
        %p187 = pneg %p71
        %p188 = pneg %p95
        %p189 = pneg %p92
        %p190 = pneg %p123
        %p191 = pneg %p120
        %s192 = sand.u32 %s110, 1
        %s193 = scalar_lea.sflag [#allocation5], %s192
        %s194 = sand.u32 %s110, 1
        %s195 = smul.addr %s194, 8
        %s196 = scalar_lea.vmem [#allocation6], %s195
        %p197 = scmp.lt.s32.totalorder %s22, 1
        %s198 = scalar_select %p197, %s22, 1
        %p199 = scmp.lt.s32.totalorder %s23, 0
        %s200 = scalar_select %p199, %s23, 0
        %s201 = sadd.s32 %s200, %s198
        %s202 = smul.addr %s201, 4
        %s203 = scalar_lea.vmem %s0, %s202
        %v205 = vld [vmem:[%s203] sm:$0xf]
        %v206 = vpack.c.bf16 %v205, %v205
        %p207 = scmp.eq.s32.totalorder %s23, 0
        // Predicated region
        $region37: #{tpu_custom_call.1} parent=31 // pred_check
          %p208 = pneg %p207
        $region38: #{tpu_custom_call.1} parent=31 // pred_check_branch
          %210 = sbr.rel (%p208) target = $region40
        $region39: #{tpu_custom_call.1} parent=31 // pred_region
          %vm211 = vcmask 25600
          %212 = vst.msk [vmem:[#allocation2] sm:$0x3] %vm211, 0
        $region40: #{tpu_custom_call.1} parent=31 // pred_fallthru
          _
        %v213 = vld [vmem:[#allocation2] sm:$0x3]
        %v216 = vunpack.c.l.s4 1983009808
        %v217 = vunpack.c.0.s8 %v216
        %v218 = vlaneseq
        %v219 = vshrl.u32 %v218, 7
        %v220 = vsub.s32 %v217, %v219
        %v221 = vrot.slane %v206, %v220
        %222 = vrot.lane.b32.xlu0 %v221, 116
        %v223 = vpop.permute.xlu0 %222
        %vm225 = vcmask 25600
        %226 = vst.msk [vmem:[#allocation2] sm:$0x3] %vm225, %v223
        %227 = vrot.lane.b32.xlu0 %v206, 4
        %v228 = vpop.permute.xlu0 %227
        %vm229 = vcmask 31744
        %v232 = vsel %vm229, %v213, %v228
        %vm233 = vcmask 1041408
        %v235 = vsel %vm233, %v232, 0
        %v239 = vunpack.c.l.s4 1983009808
        %v240 = vunpack.c.0.s8 %v239
        %v241 = vlaneseq
        %v242 = vshrl.u32 %v241, 7
        %v243 = vsub.s32 %v240, %v242
        %v244 = vrot.slane %v213, %v243
        %245 = vrot.lane.b32.xlu0 %v244, 126
        %v246 = vpop.permute.xlu0 %245
        %247 = vrot.lane.b32.xlu0 %v206, 2
        %v248 = vpop.permute.xlu0 %247
        %vm249 = vcmask 15360
        %v252 = vsel %vm249, %v246, %v248
        %v253 = vsel %vm233, %v252, 0
        %v256 = vsel %vm233, %v206, 0
        %v258 = vld [vmem:[#allocation3] sm:$0xf]
        %v259 = vld [vmem:[%s2] sm:$0xff]
        %261 = vset.pattern.permute.xlu0 0
        %262 = vperm.xlu0 %261, %v259
        %v263 = vpop.permute.xlu0 %262
        %vm265 = vcmask 392192
        %v267 = vsel %vm265, %v258, 0
        %269 = vmatprep.subr.bf16.mxu0 0
        %270 = vmatpush1.bf16.msra.mxu0 0
        %271 = vmatprep.subr.bf16.mxu0 0
        %272 = vmatpush1.bf16.msra.mxu0 0
        %273 = vmatprep.subr.bf16.mxu0 0
        %274 = vmatpush1.bf16.msra.mxu0 0
        %275 = vmatprep.subr.bf16.mxu0 0
        %276 = vmatpush1.bf16.msra.mxu0 0
        %277 = vmatprep.subr.bf16.mxu0 0
        %278 = vmatpush1.bf16.msra.mxu0 0
        %279 = vmatprep.subr.bf16.mxu0 0
        %280 = vmatpush1.bf16.msra.mxu0 %v256
        %281 = vmatprep.subr.bf16.mxu0 0
        %282 = vmatpush1.bf16.msra.mxu0 %v253
        %283 = vmatprep.subr.bf16.mxu0 0
        %284 = vmatpush1.bf16.msra.mxu0 %v235
        %285 = vmatprep.subr.bf16.mxu0 0
        %286 = vmatpush2.bf16.msra.mxu0 0
        %287 = vmatprep.subr.bf16.mxu0 0
        %288 = vmatpush2.bf16.msra.mxu0 0
        %289 = vmatprep.subr.bf16.mxu0 0
        %290 = vmatpush2.bf16.msra.mxu0 0
        %291 = vmatprep.subr.bf16.mxu0 0
        %292 = vmatpush2.bf16.msra.mxu0 0
        %293 = vmatprep.subr.bf16.mxu0 0
        %294 = vmatpush2.bf16.msra.mxu0 0
        %295 = vmatprep.subr.bf16.mxu0 0
        %296 = vmatpush2.bf16.msra.mxu0 0
        %297 = vmatprep.subr.bf16.mxu0 0
        %298 = vmatpush2.bf16.msra.mxu0 0
        %299 = vmatprep.subr.bf16.mxu0 0
        %300 = vmatpush2.bf16.msra.mxu0 0
        %301 = vmatprep.mubr.bf16.mxu0 0
        %302 = vmatmul.mubr.bf16.gmra.mxu0 %v267
        %v303 = vpop.f32.mrf.mxu0
        %v304 = vadd.f32 %v263, %v303
        %v305 = vpop.f32.mrf.mxu0
        %v306 = vpop.f32.mrf.mxu0
        %v307 = vpop.f32.mrf.mxu0
        %308 = vdwg.mxu0
        %vm309 = vcmask 130048
        %310 = vst.msk [vmem:[%s196] sm:$0xff] %vm309, %v304
        %s311 = sand.u32 %s110, 1
        %s312 = scalar_lea.sflag [#allocation5], %s311
        %s313 = sand.u32 %s110, 1
        %s314 = smul.addr %s313, 8
        %s315 = scalar_lea.vmem [#allocation6], %s314
        // Predicated region
        $region41: #{tpu_custom_call.1} parent=31 // pred_check
          %p316 = pneg %p120
        $region42: #{tpu_custom_call.1} parent=31 // pred_check_branch
          %318 = sbr.rel (%p316) target = $region44
        $region43: #{tpu_custom_call.1} parent=31 // pred_region
          %s320 = ssub.s32 128, 128
          %321 = vsyncadd %s312, %s320
          %s322 = sadd.s32 %s23, %s22
          %s323 = smul.addr %s322, 128
          %s324 = scalar_lea.hbm %s3, %s323
          %s326 = sshll.u32 %s315, 4
          %s327 = int_to_ptr.vmem [resolvable:$true] %s326
          %329 = dma.vmem_to_hbm [thread:$0]  %s327, 128, %s324, %s312
        $region44: #{tpu_custom_call.1} parent=31 // pred_fallthru
          _
      $region32: #{tpu_custom_call.1} parent=5 // pred_fallthru
        _
      %p330 = scmp.le.s32.totalorder 2, %s13
      // Predicated region
      $region45: #{tpu_custom_call.1} parent=5 // pred_check
        %p331 = pneg %p330
      $region46: #{tpu_custom_call.1} parent=5 // pred_check_branch
        %333 = sbr.rel (%p331) target = $region48
      $region47: #{tpu_custom_call.1} parent=5 // pred_region
        %s334 = ssub.s32 %s13, 2
        // Predicated region
        $region49: #{tpu_custom_call.1} parent=47 // pred_check
          %p335 = pneg %p126
        $region50: #{tpu_custom_call.1} parent=47 // pred_check_branch
          %337 = sbr.rel (%p335) target = $region52
        $region51: #{tpu_custom_call.1} parent=47 // pred_region
          %s338 = sand.u32 %s111, 1
          %s339 = scalar_lea.sflag [#allocation5], %s338
          %s340 = sand.u32 %s111, 1
          %s341 = smul.addr %s340, 8
          %s342 = scalar_lea.vmem [#allocation6], %s341
          %343 = dma.done %s339, 128
        $region52: #{tpu_custom_call.1} parent=47 // pred_fallthru
          _
      $region48: #{tpu_custom_call.1} parent=5 // pred_fallthru
        _
    $region6: #{tpu_custom_call.1} parent=1 // loop_footer
      %s17 = sadd.s32 1, %s13
    $region7: #{tpu_custom_call.1} parent=1 // loop_footer_branch
      %12 = sbr.rel target = $region3
    $region8: #{tpu_custom_call.1} parent=1 // loop_exit
      _
    %344 = vsyncpa [#allocation4], 1
    %s345 = scalar_lea.sflag [#allocation4], 1
    %346 = vsyncpa %s345, 1
    %347 = vsyncpa [#allocation5], 1
    %s348 = scalar_lea.sflag [#allocation5], 1
    %349 = vsyncpa %s348, 1

</llo_original>
